<compile_context>
chip_gen: v7x
topology: tpu7x:2x2x1
jax: 0.10.0
libtpu: 0.0.40
codegen_flags: <defaults>
</compile_context>

<pallas_src>
import functools

import jax
import jax.numpy as jnp
from jax.experimental import pallas as pl
from jax.experimental.pallas import tpu as pltpu


def _finetune_fwd_kernel(x_ref, we1_ref, be1_ref, we2_ref, be2_ref,
                         wp_ref, bp_ref, wc_ref, bc_ref, out_ref,
                         *, latent_size, num_classes):
    x = x_ref[...].astype(jnp.float32)

    # Encoder MLP (frozen-ness is a training-time concern; forward is identical).
    h = jnp.dot(x, we1_ref[...], preferred_element_type=jnp.float32) + be1_ref[...]
    h = jnp.maximum(h, 0.0)
    enc = jnp.dot(h, we2_ref[...], preferred_element_type=jnp.float32) + be2_ref[...]

    # mu = encoder_output[:, :latent_size]
    mu = enc[:, :latent_size]

    # Post-latent layer: Linear -> ReLU -> Dropout (identity at inference).
    p = jnp.dot(mu, wp_ref[...], preferred_element_type=jnp.float32) + bp_ref[...]
    p = jnp.maximum(p, 0.0)

    # Classifier head (lane-padded to 128 outputs; pad columns have zero weights).
    logits = jnp.dot(p, wc_ref[...], preferred_element_type=jnp.float32) + bc_ref[...]

    if num_classes == 2:
        out = 1.0 / (1.0 + jnp.exp(-logits))                      # Sigmoid
    else:
        col = jax.lax.broadcasted_iota(jnp.int32, logits.shape, 1)
        masked = jnp.where(col < num_classes, logits, -1e30)      # mask lane padding
        m = jnp.max(masked, axis=-1, keepdims=True)
        e = jnp.exp(masked - m)
        out = e / jnp.sum(e, axis=-1, keepdims=True)              # Softmax(dim=1)

    out_ref[...] = out.astype(out_ref.dtype)


def finetune_forward(x, params, *, latent_size, num_classes, block_b=256):
    """params = (W_e1, b_e1, W_e2, b_e2, W_post, b_post, W_cls, b_cls)."""
    we1, be1, we2, be2, wp, bp, wc, bc = [jnp.asarray(p, jnp.float32) for p in params]
    x = jnp.asarray(x, jnp.float32)
    batch, d_in = x.shape

    # --- batch tiling: lane/sublane-aligned row blocks, parallel grid --------
    tb = min(block_b, max(8, ((batch + 7) // 8) * 8))
    tb = max(8, (tb // 8) * 8)
    b_pad = ((batch + tb - 1) // tb) * tb
    x_p = jnp.pad(x, ((0, b_pad - batch), (0, 0)))

    # --- lane-pad classifier head so the kernel output is 128-lane dense -----
    c_out = wc.shape[1]
    c_pad = ((c_out + 127) // 128) * 128
    wc_p = jnp.pad(wc, ((0, 0), (0, c_pad - c_out)))
    bc_p = jnp.pad(bc.reshape(1, -1), ((0, 0), (0, c_pad - c_out)))

    be1_2 = be1.reshape(1, -1)
    be2_2 = be2.reshape(1, -1)
    bp_2 = bp.reshape(1, -1)

    hidden = we1.shape[1]
    enc_out = we2.shape[1]
    post = wp.shape[1]

    kernel = functools.partial(_finetune_fwd_kernel,
                               latent_size=latent_size,
                               num_classes=num_classes)

    full = lambda i: (0, 0)   # weights/biases: same (whole-array) block every step

    out = pl.pallas_call(
        kernel,
        out_shape=jax.ShapeDtypeStruct((b_pad, c_pad), jnp.float32),
        grid_spec=pl.GridSpec(
            grid=(b_pad // tb,),
            in_specs=[
                pl.BlockSpec((tb, d_in), lambda i: (i, 0)),      # x (tiled over batch)
                pl.BlockSpec((d_in, hidden), full),              # W_e1
                pl.BlockSpec((1, hidden), full),                 # b_e1
                pl.BlockSpec((hidden, enc_out), full),           # W_e2
                pl.BlockSpec((1, enc_out), full),                # b_e2
                pl.BlockSpec((latent_size, post), full),         # W_post
                pl.BlockSpec((1, post), full),                   # b_post
                pl.BlockSpec((post, c_pad), full),               # W_cls (lane-padded)
                pl.BlockSpec((1, c_pad), full),                  # b_cls (lane-padded)
            ],
            out_specs=pl.BlockSpec((tb, c_pad), lambda i: (i, 0)),
        ),
        compiler_params=pltpu.CompilerParams(
            dimension_semantics=("parallel",),
            vmem_limit_bytes=32 * 1024 * 1024,   # fits scoped default on v5e/v6e/v7x
        ),
    )(x_p, we1, be1_2, we2, be2_2, wp, bp_2, wc_p, bc_p)

    return out[:batch, :c_out]


def _reference_forward(x, params, *, latent_size, num_classes):
    we1, be1, we2, be2, wp, bp, wc, bc = [jnp.asarray(p, jnp.float32) for p in params]
    x = jnp.asarray(x, jnp.float32)
    h = jnp.maximum(x @ we1 + be1, 0.0)
    enc = h @ we2 + be2
    mu = enc[:, :latent_size]
    p = jnp.maximum(mu @ wp + bp, 0.0)
    logits = p @ wc + bc
    if num_classes == 2:
        return jax.nn.sigmoid(logits)
    return jax.nn.softmax(logits, axis=-1)


if __name__ == "__main__":
    key = jax.random.PRNGKey(0)
    ks = jax.random.split(key, 9)

    # Small shapes consistent with the module's defaults.
    batch = 8
    d_in = 32                    # encoder input features
    hidden = 64                  # encoder hidden width
    latent_size = 16             # VAE latent size
    post_latent_layer_size = 128 # module default
    num_classes = 2              # binary head: Linear(post, 1) + Sigmoid
    c_out = 1 if num_classes == 2 else num_classes

    def init(k, shape, fan_in):
        return jax.random.uniform(k, shape, jnp.float32, -1.0, 1.0) / float(fan_in) ** 0.5

    we1 = init(ks[0], (d_in, hidden), d_in)
    be1 = init(ks[1], (hidden,), d_in)
    we2 = init(ks[2], (hidden, 2 * latent_size), hidden)   # [mu | logvar]
    be2 = init(ks[3], (2 * latent_size,), hidden)
    wp = init(ks[4], (latent_size, post_latent_layer_size), latent_size)
    bp = init(ks[5], (post_latent_layer_size,), latent_size)
    wc = init(ks[6], (post_latent_layer_size, c_out), post_latent_layer_size)
    bc = init(ks[7], (c_out,), post_latent_layer_size)
    x = jax.random.normal(ks[8], (batch, d_in), jnp.float32)

    params = (we1, be1, we2, be2, wp, bp, wc, bc)

    out = finetune_forward(x, params, latent_size=latent_size, num_classes=num_classes)
    out = jax.block_until_ready(out)

    ref = _reference_forward(x, params, latent_size=latent_size, num_classes=num_classes)
    assert out.shape == (batch, c_out), out.shape
    assert jnp.allclose(out, ref, rtol=1e-5, atol=1e-6), (out, ref)

    print("KERNEL_OK")
</pallas_src>

<mosaic_0001>
module attributes {stable_mosaic.version = 11 : i64} {
  func.func @_finetune_fwd_kernel(%arg0: i32, %arg1: memref<8x32xf32, #tpu.memory_space<vmem>>, %arg2: memref<32x64xf32, #tpu.memory_space<vmem>>, %arg3: memref<1x64xf32, #tpu.memory_space<vmem>>, %arg4: memref<64x32xf32, #tpu.memory_space<vmem>>, %arg5: memref<1x32xf32, #tpu.memory_space<vmem>>, %arg6: memref<16x128xf32, #tpu.memory_space<vmem>>, %arg7: memref<1x128xf32, #tpu.memory_space<vmem>>, %arg8: memref<128x128xf32, #tpu.memory_space<vmem>>, %arg9: memref<1x128xf32, #tpu.memory_space<vmem>>, %arg10: memref<8x128xf32, #tpu.memory_space<vmem>>) attributes {dimension_semantics = [#tpu.dimension_semantics<parallel>], iteration_bounds = array<i64: 1>, scalar_prefetch = 0 : i64, scratch_operands = 0 : i64, tpu.core_type = #tpu.core_type<tc>, window_params = [{transform_indices = @transform_0, window_bounds = array<i64: 8, 32>}, {pipeline_mode = #tpu.pipeline_mode<synchronous>, transform_indices = @transform_1, window_bounds = array<i64: 32, 64>}, {pipeline_mode = #tpu.pipeline_mode<synchronous>, transform_indices = @transform_2, window_bounds = array<i64: 1, 64>}, {pipeline_mode = #tpu.pipeline_mode<synchronous>, transform_indices = @transform_3, window_bounds = array<i64: 64, 32>}, {pipeline_mode = #tpu.pipeline_mode<synchronous>, transform_indices = @transform_4, window_bounds = array<i64: 1, 32>}, {pipeline_mode = #tpu.pipeline_mode<synchronous>, transform_indices = @transform_5, window_bounds = array<i64: 16, 128>}, {pipeline_mode = #tpu.pipeline_mode<synchronous>, transform_indices = @transform_6, window_bounds = array<i64: 1, 128>}, {pipeline_mode = #tpu.pipeline_mode<synchronous>, transform_indices = @transform_7, window_bounds = array<i64: 128, 128>}, {pipeline_mode = #tpu.pipeline_mode<synchronous>, transform_indices = @transform_8, window_bounds = array<i64: 1, 128>}, {transform_indices = @transform_9, window_bounds = array<i64: 8, 128>}]} {
    %c0 = arith.constant 0 : index
    %c0_0 = arith.constant 0 : index
    %0 = vector.load %arg1[%c0, %c0_0] : memref<8x32xf32, #tpu.memory_space<vmem>>, vector<8x32xf32>
    %c0_1 = arith.constant 0 : index
    %c0_2 = arith.constant 0 : index
    %1 = vector.load %arg2[%c0_1, %c0_2] : memref<32x64xf32, #tpu.memory_space<vmem>>, vector<32x64xf32>
    %cst = arith.constant dense<0.000000e+00> : vector<8x64xf32>
    %2 = tpu.matmul %0, %1, %cst {dimension_numbers = #tpu.dot_dimension_numbers<[1], [0], [0], [1], [0, 0, 1, 1], [], []>} : vector<8x32xf32>, vector<32x64xf32>, vector<8x64xf32> -> vector<8x64xf32>
    %c0_3 = arith.constant 0 : index
    %c0_4 = arith.constant 0 : index
    %3 = vector.load %arg3[%c0_3, %c0_4] : memref<1x64xf32, #tpu.memory_space<vmem>>, vector<1x64xf32>
    %4 = vector.broadcast %3 : vector<1x64xf32> to vector<8x64xf32>
    %5 = arith.addf %2, %4 : vector<8x64xf32>
    %cst_5 = arith.constant 0.000000e+00 : f32
    %6 = vector.broadcast %cst_5 : f32 to vector<8x64xf32>
    %7 = arith.maximumf %5, %6 : vector<8x64xf32>
    %c0_6 = arith.constant 0 : index
    %c0_7 = arith.constant 0 : index
    %8 = vector.load %arg4[%c0_6, %c0_7] : memref<64x32xf32, #tpu.memory_space<vmem>>, vector<64x32xf32>
    %cst_8 = arith.constant dense<0.000000e+00> : vector<8x32xf32>
    %9 = tpu.matmul %7, %8, %cst_8 {dimension_numbers = #tpu.dot_dimension_numbers<[1], [0], [0], [1], [0, 0, 1, 1], [], []>} : vector<8x64xf32>, vector<64x32xf32>, vector<8x32xf32> -> vector<8x32xf32>
    %c0_9 = arith.constant 0 : index
    %c0_10 = arith.constant 0 : index
    %10 = vector.load %arg5[%c0_9, %c0_10] : memref<1x32xf32, #tpu.memory_space<vmem>>, vector<1x32xf32>
    %11 = vector.broadcast %10 : vector<1x32xf32> to vector<8x32xf32>
    %12 = arith.addf %9, %11 : vector<8x32xf32>
    %13 = vector.extract_strided_slice %12 {offsets = [0, 0], sizes = [8, 16], strides = [1, 1]} : vector<8x32xf32> to vector<8x16xf32>
    %c0_11 = arith.constant 0 : index
    %c0_12 = arith.constant 0 : index
    %14 = vector.load %arg6[%c0_11, %c0_12] : memref<16x128xf32, #tpu.memory_space<vmem>>, vector<16x128xf32>
    %cst_13 = arith.constant dense<0.000000e+00> : vector<8x128xf32>
    %15 = tpu.matmul %13, %14, %cst_13 {dimension_numbers = #tpu.dot_dimension_numbers<[1], [0], [0], [1], [0, 0, 1, 1], [], []>} : vector<8x16xf32>, vector<16x128xf32>, vector<8x128xf32> -> vector<8x128xf32>
    %c0_14 = arith.constant 0 : index
    %c0_15 = arith.constant 0 : index
    %16 = vector.load %arg7[%c0_14, %c0_15] : memref<1x128xf32, #tpu.memory_space<vmem>>, vector<1x128xf32>
    %17 = vector.broadcast %16 : vector<1x128xf32> to vector<8x128xf32>
    %18 = arith.addf %15, %17 : vector<8x128xf32>
    %cst_16 = arith.constant 0.000000e+00 : f32
    %19 = vector.broadcast %cst_16 : f32 to vector<8x128xf32>
    %20 = arith.maximumf %18, %19 : vector<8x128xf32>
    %c0_17 = arith.constant 0 : index
    %c0_18 = arith.constant 0 : index
    %21 = vector.load %arg8[%c0_17, %c0_18] : memref<128x128xf32, #tpu.memory_space<vmem>>, vector<128x128xf32>
    %cst_19 = arith.constant dense<0.000000e+00> : vector<8x128xf32>
    %22 = tpu.matmul %20, %21, %cst_19 {dimension_numbers = #tpu.dot_dimension_numbers<[1], [0], [0], [1], [0, 0, 1, 1], [], []>} : vector<8x128xf32>, vector<128x128xf32>, vector<8x128xf32> -> vector<8x128xf32>
    %c0_20 = arith.constant 0 : index
    %c0_21 = arith.constant 0 : index
    %23 = vector.load %arg9[%c0_20, %c0_21] : memref<1x128xf32, #tpu.memory_space<vmem>>, vector<1x128xf32>
    %24 = vector.broadcast %23 : vector<1x128xf32> to vector<8x128xf32>
    %25 = arith.addf %22, %24 : vector<8x128xf32>
    %cst_22 = arith.constant 0.000000e+00 : f32
    %26 = vector.broadcast %cst_22 : f32 to vector<8x128xf32>
    %27 = arith.subf %26, %25 : vector<8x128xf32>
    %28 = math.exp %27 : vector<8x128xf32>
    %cst_23 = arith.constant 1.000000e+00 : f32
    %29 = vector.broadcast %cst_23 : f32 to vector<8x128xf32>
    %30 = arith.addf %29, %28 : vector<8x128xf32>
    %cst_24 = arith.constant 1.000000e+00 : f32
    %31 = vector.broadcast %cst_24 : f32 to vector<8x128xf32>
    %32 = arith.divf %31, %30 : vector<8x128xf32>
    %c0_25 = arith.constant 0 : index
    %c0_26 = arith.constant 0 : index
    %33 = vector.load %arg10[%c0_25, %c0_26] : memref<8x128xf32, #tpu.memory_space<vmem>>, vector<8x128xf32>
    tpu.vector_store %arg10[%c0_25, %c0_26], %32 {strides = array<i32>} : memref<8x128xf32, #tpu.memory_space<vmem>>, vector<8x128xf32>,
    return
  }
  func.func @transform_0(%arg0: i32) -> (i32, i32) {
    %c0_i32 = arith.constant 0 : i32
    %c0_i32_0 = arith.constant 0 : i32
    return %arg0, %c0_i32 : i32, i32
  }
  func.func @transform_1(%arg0: i32) -> (i32, i32) {
    %c0_i32 = arith.constant 0 : i32
    %c0_i32_0 = arith.constant 0 : i32
    %c0_i32_1 = arith.constant 0 : i32
    return %c0_i32, %c0_i32_0 : i32, i32
  }
  func.func @transform_2(%arg0: i32) -> (i32, i32) {
    %c0_i32 = arith.constant 0 : i32
    %c0_i32_0 = arith.constant 0 : i32
    %c0_i32_1 = arith.constant 0 : i32
    return %c0_i32, %c0_i32_0 : i32, i32
  }
  func.func @transform_3(%arg0: i32) -> (i32, i32) {
    %c0_i32 = arith.constant 0 : i32
    %c0_i32_0 = arith.constant 0 : i32
    %c0_i32_1 = arith.constant 0 : i32
    return %c0_i32, %c0_i32_0 : i32, i32
  }
  func.func @transform_4(%arg0: i32) -> (i32, i32) {
    %c0_i32 = arith.constant 0 : i32
    %c0_i32_0 = arith.constant 0 : i32
    %c0_i32_1 = arith.constant 0 : i32
    return %c0_i32, %c0_i32_0 : i32, i32
  }
  func.func @transform_5(%arg0: i32) -> (i32, i32) {
    %c0_i32 = arith.constant 0 : i32
    %c0_i32_0 = arith.constant 0 : i32
    %c0_i32_1 = arith.constant 0 : i32
    return %c0_i32, %c0_i32_0 : i32, i32
  }
  func.func @transform_6(%arg0: i32) -> (i32, i32) {
    %c0_i32 = arith.constant 0 : i32
    %c0_i32_0 = arith.constant 0 : i32
    %c0_i32_1 = arith.constant 0 : i32
    return %c0_i32, %c0_i32_0 : i32, i32
  }
  func.func @transform_7(%arg0: i32) -> (i32, i32) {
    %c0_i32 = arith.constant 0 : i32
    %c0_i32_0 = arith.constant 0 : i32
    %c0_i32_1 = arith.constant 0 : i32
    return %c0_i32, %c0_i32_0 : i32, i32
  }
  func.func @transform_8(%arg0: i32) -> (i32, i32) {
    %c0_i32 = arith.constant 0 : i32
    %c0_i32_0 = arith.constant 0 : i32
    %c0_i32_1 = arith.constant 0 : i32
    return %c0_i32, %c0_i32_0 : i32, i32
  }
  func.func @transform_9(%arg0: i32) -> (i32, i32) {
    %c0_i32 = arith.constant 0 : i32
    %c0_i32_0 = arith.constant 0 : i32
    return %arg0, %c0_i32 : i32, i32
  }
}

</mosaic_0001>

<llo_original>
// kernel: tpu_custom_call.1
$region0: #{tpu_custom_call.1}
  #allocation0 [shape = 'u32[]', space=smem, size = 0x4, offset = 0x4, fixed_abs, tag = 'smem constant byte address 0x4 - core index']
  #allocation1 [shape = 'u32[144,128]{1,0:T(1,128)}', space=vmem, size = 0x12000, scoped, tag = 'internal scratch']
  %s0 = inlined_call_operand.vmem [shape: f32[8,32], index: 0, kind: input, shape index: {}]
  %s1 = inlined_call_operand.vmem [shape: f32[32,64], index: 1, kind: input, shape index: {}]
  %s2 = inlined_call_operand.vmem [shape: f32[1,64], index: 2, kind: input, shape index: {}]
  %s3 = inlined_call_operand.vmem [shape: f32[64,32], index: 3, kind: input, shape index: {}]
  %s4 = inlined_call_operand.vmem [shape: f32[1,32], index: 4, kind: input, shape index: {}]
  %s5 = inlined_call_operand.vmem [shape: f32[16,128], index: 5, kind: input, shape index: {}]
  %s6 = inlined_call_operand.vmem [shape: f32[1,128], index: 6, kind: input, shape index: {}]
  %s7 = inlined_call_operand.hbm [shape: f32[128,128], index: 7, kind: input, shape index: {}]
  %s8 = inlined_call_operand.vmem [shape: f32[1,128], index: 8, kind: input, shape index: {}]
  %s9 = inlined_call_operand.hbm [shape: f32[8,128], index: 9, kind: output, shape index: {}]
  %s10 = sld [smem:[#allocation0]]
  $region50: #{tpu_custom_call.1} parent=0
    _
  %s12 = ssub.s32 1, %s10
  %s13 = scalar_select 0, %s12, %s10
  $region1: #{tpu_custom_call.1} parent=0
    #allocation2 [shape = 'u8[65536]{0}', space=vmem, size = 0x10000, scoped, tag = 'input window, operand 7, single buffered']
    #allocation3 [shape = 's32[1]{0}', space=sflag, size = 0x4, scoped, tag = 'scoped memory for tpu_custom_call.1']
    #allocation4 [shape = 's32[1]{0}', space=sflag, size = 0x4, scoped, tag = 'scoped memory for tpu_custom_call.1']
    #allocation5 [shape = 'u8[4096]{0}', space=vmem, size = 0x1000, scoped, tag = 'output window, operand 0, single buffered']
    %14 = vsyncpa [#allocation3], 0
    %15 = vsyncpa [#allocation4], 0
    // Predicated region
    $region2: #{tpu_custom_call.1} parent=1 // pred_check
      _
    $region3: #{tpu_custom_call.1} parent=1 // pred_check_branch
      %17 = sbr.rel (0) target = $region5
    $region4: #{tpu_custom_call.1} parent=1 // pred_region
      _
    $region5: #{tpu_custom_call.1} parent=1 // pred_fallthru
      _
    // Predicated region
    $region6: #{tpu_custom_call.1} parent=1 // pred_check
      _
    $region7: #{tpu_custom_call.1} parent=1 // pred_check_branch
      %19 = sbr.rel (0) target = $region9
    $region8: #{tpu_custom_call.1} parent=1 // pred_region
      _
    $region9: #{tpu_custom_call.1} parent=1 // pred_fallthru
      _
    // Predicated region
    $region10: #{tpu_custom_call.1} parent=1 // pred_check
      _
    $region11: #{tpu_custom_call.1} parent=1 // pred_check_branch
      %21 = sbr.rel (0) target = $region13
    $region12: #{tpu_custom_call.1} parent=1 // pred_region
      _
    $region13: #{tpu_custom_call.1} parent=1 // pred_fallthru
      _
    // Predicated region
    $region14: #{tpu_custom_call.1} parent=1 // pred_check
      _
    $region15: #{tpu_custom_call.1} parent=1 // pred_check_branch
      %23 = sbr.rel (0) target = $region17
    $region16: #{tpu_custom_call.1} parent=1 // pred_region
      _
    $region17: #{tpu_custom_call.1} parent=1 // pred_fallthru
      _
    // Predicated region
    $region18: #{tpu_custom_call.1} parent=1 // pred_check
      _
    $region19: #{tpu_custom_call.1} parent=1 // pred_check_branch
      %25 = sbr.rel (0) target = $region21
    $region20: #{tpu_custom_call.1} parent=1 // pred_region
      _
    $region21: #{tpu_custom_call.1} parent=1 // pred_fallthru
      _
    // Predicated region
    $region22: #{tpu_custom_call.1} parent=1 // pred_check
      _
    $region23: #{tpu_custom_call.1} parent=1 // pred_check_branch
      %27 = sbr.rel (0) target = $region25
    $region24: #{tpu_custom_call.1} parent=1 // pred_region
      _
    $region25: #{tpu_custom_call.1} parent=1 // pred_fallthru
      _
    // Predicated region
    $region26: #{tpu_custom_call.1} parent=1 // pred_check
      _
    $region27: #{tpu_custom_call.1} parent=1 // pred_check_branch
      %29 = sbr.rel (0) target = $region29
    $region28: #{tpu_custom_call.1} parent=1 // pred_region
      _
    $region29: #{tpu_custom_call.1} parent=1 // pred_fallthru
      _
    // Predicated region
    $region30: #{tpu_custom_call.1} parent=1 // pred_check
      _
    $region31: #{tpu_custom_call.1} parent=1 // pred_check_branch
      %31 = sbr.rel (0) target = $region33
    $region32: #{tpu_custom_call.1} parent=1 // pred_region
      %s33 = ssub.s32 2048, 2048
      %34 = vsyncadd [#allocation3], %s33
      %s35 = sshll.u32 [#allocation2], 4
      %s36 = int_to_ptr.vmem [resolvable:$true] %s35
      %41 = dma.hbm_to_vmem [thread:$0]  %s7, 2048, %s36, [#allocation3], 128, 128, 8
    $region33: #{tpu_custom_call.1} parent=1 // pred_fallthru
      _
    // Predicated region
    $region34: #{tpu_custom_call.1} parent=1 // pred_check
      _
    $region35: #{tpu_custom_call.1} parent=1 // pred_check_branch
      %43 = sbr.rel (0) target = $region37
    $region36: #{tpu_custom_call.1} parent=1 // pred_region
      _
    $region37: #{tpu_custom_call.1} parent=1 // pred_fallthru
      _
    // Predicated region
    $region38: #{tpu_custom_call.1} parent=1 // pred_check
      _
    $region39: #{tpu_custom_call.1} parent=1 // pred_check_branch
      %45 = sbr.rel (0) target = $region41
    $region40: #{tpu_custom_call.1} parent=1 // pred_region
      %46 = dma.done [#allocation3], 2048
    $region41: #{tpu_custom_call.1} parent=1 // pred_fallthru
      _
    %v47 = vld [vmem:[%s0] sm:$0xff]
    %v48 = vld [vmem:[%s1] sm:$0xff]
    %v49 = vld [vmem:[%s1 + $0x8] sm:$0xff]
    %v50 = vld [vmem:[%s1 + $0x10] sm:$0xff]
    %v51 = vld [vmem:[%s1 + $0x18] sm:$0xff]
    %v52 = vld [vmem:[%s2] sm:$0x1]
    %v54 = vlaneseq
    %v55 = vshrl.u32 %v54, 7
    %v56 = vsub.s32 0, %v55
    %v57 = vrot.slane %v52, %v56
    %vm59 = vcmask 261120
    %v61 = vsel %vm59, %v47, 0
    %63 = vmatprep.subr.mxu0 0.0
    %64 = vmatpush1.msra.mxu0 %v48
    %65 = vmatprep.subr.mxu0 0.0
    %66 = vmatpush1.msra.mxu0 %v49
    %67 = vmatprep.subr.mxu0 0.0
    %68 = vmatpush1.msra.mxu0 %v50
    %69 = vmatprep.subr.mxu0 0.0
    %70 = vmatpush1.msra.mxu0 %v51
    %71 = vmatprep.subr.mxu0 0.0
    %72 = vmatpush1.msra.mxu0 0.0
    %73 = vmatprep.subr.mxu0 0.0
    %74 = vmatpush1.msra.mxu0 0.0
    %75 = vmatprep.subr.mxu0 0.0
    %76 = vmatpush1.msra.mxu0 0.0
    %77 = vmatprep.subr.mxu0 0.0
    %78 = vmatpush1.msra.mxu0 0.0
    %79 = vmatprep.subr.mxu0 0.0
    %80 = vmatpush1.msra.mxu0 0.0
    %81 = vmatprep.subr.mxu0 0.0
    %82 = vmatpush1.msra.mxu0 0.0
    %83 = vmatprep.subr.mxu0 0.0
    %84 = vmatpush1.msra.mxu0 0.0
    %85 = vmatprep.subr.mxu0 0.0
    %86 = vmatpush1.msra.mxu0 0.0
    %87 = vmatprep.subr.mxu0 0.0
    %88 = vmatpush1.msra.mxu0 0.0
    %89 = vmatprep.subr.mxu0 0.0
    %90 = vmatpush1.msra.mxu0 0.0
    %91 = vmatprep.subr.mxu0 0.0
    %92 = vmatpush1.msra.mxu0 0.0
    %93 = vmatprep.subr.mxu0 0.0
    %94 = vmatpush1.msra.mxu0 0.0
    %95 = vmatprep.subr.mxu0 0.0
    %96 = vmatpush1.msra.mxu0 0.0
    %97 = vmatprep.subr.mxu0 0.0
    %98 = vmatpush1.msra.mxu0 0.0
    %99 = vmatprep.subr.mxu0 0.0
    %100 = vmatpush1.msra.mxu0 0.0
    %101 = vmatprep.subr.mxu0 0.0
    %102 = vmatpush1.msra.mxu0 0.0
    %103 = vmatprep.subr.mxu0 0.0
    %104 = vmatpush1.msra.mxu0 0.0
    %105 = vmatprep.subr.mxu0 0.0
    %106 = vmatpush1.msra.mxu0 0.0
    %107 = vmatprep.subr.mxu0 0.0
    %108 = vmatpush1.msra.mxu0 0.0
    %109 = vmatprep.subr.mxu0 0.0
    %110 = vmatpush1.msra.mxu0 0.0
    %111 = vmatprep.subr.mxu0 0.0
    %112 = vmatpush1.msra.mxu0 0.0
    %113 = vmatprep.subr.mxu0 0.0
    %114 = vmatpush1.msra.mxu0 0.0
    %115 = vmatprep.subr.mxu0 0.0
    %116 = vmatpush1.msra.mxu0 0.0
    %117 = vmatprep.subr.mxu0 0.0
    %118 = vmatpush1.msra.mxu0 0.0
    %119 = vmatprep.subr.mxu0 0.0
    %120 = vmatpush1.msra.mxu0 0.0
    %121 = vmatprep.subr.mxu0 0.0
    %122 = vmatpush1.msra.mxu0 0.0
    %123 = vmatprep.subr.mxu0 0.0
    %124 = vmatpush1.msra.mxu0 0.0
    %125 = vmatprep.subr.mxu0 0.0
    %126 = vmatpush1.msra.mxu0 0.0
    %127 = vmatprep.mubr.f32.mxu0 0.0
    %128 = vmatmul.mubr.f32.gmra.mrb[0].mxu0 %v61
    %v129 = vpop.f32.mrb[0].mxu0
    %v130 = vadd.f32 %v57, %v129
    %v131 = vpop.f32.mrb[0].mxu0
    %132 = vdwg.mxu0
    %v133 = vmax.f32 %v130, 0.0
    %v134 = vld [vmem:[%s3] sm:$0xff]
    %v135 = vld [vmem:[%s3 + $0x8] sm:$0xff]
    %v136 = vld [vmem:[%s3 + $0x10] sm:$0xff]
    %v137 = vld [vmem:[%s3 + $0x18] sm:$0xff]
    %v138 = vld [vmem:[%s3 + $0x20] sm:$0xff]
    %v139 = vld [vmem:[%s3 + $0x28] sm:$0xff]
    %v140 = vld [vmem:[%s3 + $0x30] sm:$0xff]
    %v141 = vld [vmem:[%s3 + $0x38] sm:$0xff]
    %v142 = vld [vmem:[%s4] sm:$0x1]
    %v144 = vlaneseq
    %v145 = vshrl.u32 %v144, 7
    %v146 = vsub.s32 0, %v145
    %v147 = vrot.slane %v142, %v146
    %vm149 = vcmask 523264
    %v151 = vsel %vm149, %v133, 0
    %153 = vmatprep.subr.mxu0 0.0
    %154 = vmatpush1.msra.mxu0 %v134
    %155 = vmatprep.subr.mxu0 0.0
    %156 = vmatpush1.msra.mxu0 %v135
    %157 = vmatprep.subr.mxu0 0.0
    %158 = vmatpush1.msra.mxu0 %v136
    %159 = vmatprep.subr.mxu0 0.0
    %160 = vmatpush1.msra.mxu0 %v137
    %161 = vmatprep.subr.mxu0 0.0
    %162 = vmatpush1.msra.mxu0 %v138
    %163 = vmatprep.subr.mxu0 0.0
    %164 = vmatpush1.msra.mxu0 %v139
    %165 = vmatprep.subr.mxu0 0.0
    %166 = vmatpush1.msra.mxu0 %v140
    %167 = vmatprep.subr.mxu0 0.0
    %168 = vmatpush1.msra.mxu0 %v141
    %169 = vmatprep.subr.mxu0 0.0
    %170 = vmatpush1.msra.mxu0 0.0
    %171 = vmatprep.subr.mxu0 0.0
    %172 = vmatpush1.msra.mxu0 0.0
    %173 = vmatprep.subr.mxu0 0.0
    %174 = vmatpush1.msra.mxu0 0.0
    %175 = vmatprep.subr.mxu0 0.0
    %176 = vmatpush1.msra.mxu0 0.0
    %177 = vmatprep.subr.mxu0 0.0
    %178 = vmatpush1.msra.mxu0 0.0
    %179 = vmatprep.subr.mxu0 0.0
    %180 = vmatpush1.msra.mxu0 0.0
    %181 = vmatprep.subr.mxu0 0.0
    %182 = vmatpush1.msra.mxu0 0.0
    %183 = vmatprep.subr.mxu0 0.0
    %184 = vmatpush1.msra.mxu0 0.0
    %185 = vmatprep.subr.mxu0 0.0
    %186 = vmatpush1.msra.mxu0 0.0
    %187 = vmatprep.subr.mxu0 0.0
    %188 = vmatpush1.msra.mxu0 0.0
    %189 = vmatprep.subr.mxu0 0.0
    %190 = vmatpush1.msra.mxu0 0.0
    %191 = vmatprep.subr.mxu0 0.0
    %192 = vmatpush1.msra.mxu0 0.0
    %193 = vmatprep.subr.mxu0 0.0
    %194 = vmatpush1.msra.mxu0 0.0
    %195 = vmatprep.subr.mxu0 0.0
    %196 = vmatpush1.msra.mxu0 0.0
    %197 = vmatprep.subr.mxu0 0.0
    %198 = vmatpush1.msra.mxu0 0.0
    %199 = vmatprep.subr.mxu0 0.0
    %200 = vmatpush1.msra.mxu0 0.0
    %201 = vmatprep.subr.mxu0 0.0
    %202 = vmatpush1.msra.mxu0 0.0
    %203 = vmatprep.subr.mxu0 0.0
    %204 = vmatpush1.msra.mxu0 0.0
    %205 = vmatprep.subr.mxu0 0.0
    %206 = vmatpush1.msra.mxu0 0.0
    %207 = vmatprep.subr.mxu0 0.0
    %208 = vmatpush1.msra.mxu0 0.0
    %209 = vmatprep.subr.mxu0 0.0
    %210 = vmatpush1.msra.mxu0 0.0
    %211 = vmatprep.subr.mxu0 0.0
    %212 = vmatpush1.msra.mxu0 0.0
    %213 = vmatprep.subr.mxu0 0.0
    %214 = vmatpush1.msra.mxu0 0.0
    %215 = vmatprep.subr.mxu0 0.0
    %216 = vmatpush1.msra.mxu0 0.0
    %217 = vmatprep.mubr.f32.mxu0 0.0
    %218 = vmatmul.mubr.f32.gmra.mrb[0].mxu0 %v151
    %v219 = vpop.f32.mrb[0].mxu0
    %v220 = vadd.f32 %v147, %v219
    %v221 = vpop.f32.mrb[0].mxu0
    %222 = vdwg.mxu0
    %v223 = vld [vmem:[%s5] sm:$0xff]
    %v224 = vld [vmem:[%s5 + $0x8] sm:$0xff]
    %v225 = vld [vmem:[%s6] sm:$0x1]
    %v227 = vlaneseq
    %v228 = vshrl.u32 %v227, 7
    %v229 = vsub.s32 0, %v228
    %v230 = vrot.slane %v225, %v229
    %vm232 = vcmask 130048
    %v234 = vsel %vm232, %v220, 0
    %236 = vmatprep.subr.mxu0 0.0
    %237 = vmatpush1.msra.mxu0 %v223
    %238 = vmatprep.subr.mxu0 0.0
    %239 = vmatpush1.msra.mxu0 %v224
    %240 = vmatprep.subr.mxu0 0.0
    %241 = vmatpush1.msra.mxu0 0.0
    %242 = vmatprep.subr.mxu0 0.0
    %243 = vmatpush1.msra.mxu0 0.0
    %244 = vmatprep.subr.mxu0 0.0
    %245 = vmatpush1.msra.mxu0 0.0
    %246 = vmatprep.subr.mxu0 0.0
    %247 = vmatpush1.msra.mxu0 0.0
    %248 = vmatprep.subr.mxu0 0.0
    %249 = vmatpush1.msra.mxu0 0.0
    %250 = vmatprep.subr.mxu0 0.0
    %251 = vmatpush1.msra.mxu0 0.0
    %252 = vmatprep.subr.mxu0 0.0
    %253 = vmatpush1.msra.mxu0 0.0
    %254 = vmatprep.subr.mxu0 0.0
    %255 = vmatpush1.msra.mxu0 0.0
    %256 = vmatprep.subr.mxu0 0.0
    %257 = vmatpush1.msra.mxu0 0.0
    %258 = vmatprep.subr.mxu0 0.0
    %259 = vmatpush1.msra.mxu0 0.0
    %260 = vmatprep.subr.mxu0 0.0
    %261 = vmatpush1.msra.mxu0 0.0
    %262 = vmatprep.subr.mxu0 0.0
    %263 = vmatpush1.msra.mxu0 0.0
    %264 = vmatprep.subr.mxu0 0.0
    %265 = vmatpush1.msra.mxu0 0.0
    %266 = vmatprep.subr.mxu0 0.0
    %267 = vmatpush1.msra.mxu0 0.0
    %268 = vmatprep.subr.mxu0 0.0
    %269 = vmatpush1.msra.mxu0 0.0
    %270 = vmatprep.subr.mxu0 0.0
    %271 = vmatpush1.msra.mxu0 0.0
    %272 = vmatprep.subr.mxu0 0.0
    %273 = vmatpush1.msra.mxu0 0.0
    %274 = vmatprep.subr.mxu0 0.0
    %275 = vmatpush1.msra.mxu0 0.0
    %276 = vmatprep.subr.mxu0 0.0
    %277 = vmatpush1.msra.mxu0 0.0
    %278 = vmatprep.subr.mxu0 0.0
    %279 = vmatpush1.msra.mxu0 0.0
    %280 = vmatprep.subr.mxu0 0.0
    %281 = vmatpush1.msra.mxu0 0.0
    %282 = vmatprep.subr.mxu0 0.0
    %283 = vmatpush1.msra.mxu0 0.0
    %284 = vmatprep.subr.mxu0 0.0
    %285 = vmatpush1.msra.mxu0 0.0
    %286 = vmatprep.subr.mxu0 0.0
    %287 = vmatpush1.msra.mxu0 0.0
    %288 = vmatprep.subr.mxu0 0.0
    %289 = vmatpush1.msra.mxu0 0.0
    %290 = vmatprep.subr.mxu0 0.0
    %291 = vmatpush1.msra.mxu0 0.0
    %292 = vmatprep.subr.mxu0 0.0
    %293 = vmatpush1.msra.mxu0 0.0
    %294 = vmatprep.subr.mxu0 0.0
    %295 = vmatpush1.msra.mxu0 0.0
    %296 = vmatprep.subr.mxu0 0.0
    %297 = vmatpush1.msra.mxu0 0.0
    %298 = vmatprep.subr.mxu0 0.0
    %299 = vmatpush1.msra.mxu0 0.0
    %300 = vmatprep.mubr.f32.mxu0 0.0
    %301 = vmatmul.mubr.f32.gmra.mrb[0].mxu0 %v234
    %v302 = vpop.f32.mrb[0].mxu0
    %v303 = vadd.f32 %v230, %v302
    %v304 = vpop.f32.mrb[0].mxu0
    %305 = vdwg.mxu0
    %v306 = vmax.f32 %v303, 0.0
    %v307 = vld [vmem:[#allocation2] sm:$0xff]
    %v308 = vld [vmem:[#allocation2 + $0x8] sm:$0xff]
    %v309 = vld [vmem:[#allocation2 + $0x10] sm:$0xff]
    %v310 = vld [vmem:[#allocation2 + $0x18] sm:$0xff]
    %v311 = vld [vmem:[#allocation2 + $0x20] sm:$0xff]
    %v312 = vld [vmem:[#allocation2 + $0x28] sm:$0xff]
    %v313 = vld [vmem:[#allocation2 + $0x30] sm:$0xff]
    %v314 = vld [vmem:[#allocation2 + $0x38] sm:$0xff]
    %v315 = vld [vmem:[#allocation2 + $0x40] sm:$0xff]
    %v316 = vld [vmem:[#allocation2 + $0x48] sm:$0xff]
    %v317 = vld [vmem:[#allocation2 + $0x50] sm:$0xff]
    %v318 = vld [vmem:[#allocation2 + $0x58] sm:$0xff]
    %v319 = vld [vmem:[#allocation2 + $0x60] sm:$0xff]
    %v320 = vld [vmem:[#allocation2 + $0x68] sm:$0xff]
    %v321 = vld [vmem:[#allocation2 + $0x70] sm:$0xff]
    %v322 = vld [vmem:[#allocation2 + $0x78] sm:$0xff]
    %v323 = vld [vmem:[%s8] sm:$0x1]
    %v325 = vlaneseq
    %v326 = vshrl.u32 %v325, 7
    %v327 = vsub.s32 0, %v326
    %v328 = vrot.slane %v323, %v327
    %330 = vmatprep.subr.mxu0 0.0
    %331 = vmatpush1.msra.mxu0 %v307
    %332 = vmatprep.subr.mxu0 0.0
    %333 = vmatpush1.msra.mxu0 %v308
    %334 = vmatprep.subr.mxu0 0.0
    %335 = vmatpush1.msra.mxu0 %v309
    %336 = vmatprep.subr.mxu0 0.0
    %337 = vmatpush1.msra.mxu0 %v310
    %338 = vmatprep.subr.mxu0 0.0
    %339 = vmatpush1.msra.mxu0 %v311
    %340 = vmatprep.subr.mxu0 0.0
    %341 = vmatpush1.msra.mxu0 %v312
    %342 = vmatprep.subr.mxu0 0.0
    %343 = vmatpush1.msra.mxu0 %v313
    %344 = vmatprep.subr.mxu0 0.0
    %345 = vmatpush1.msra.mxu0 %v314
    %346 = vmatprep.subr.mxu0 0.0
    %347 = vmatpush1.msra.mxu0 %v315
    %348 = vmatprep.subr.mxu0 0.0
    %349 = vmatpush1.msra.mxu0 %v316
    %350 = vmatprep.subr.mxu0 0.0
    %351 = vmatpush1.msra.mxu0 %v317
    %352 = vmatprep.subr.mxu0 0.0
    %353 = vmatpush1.msra.mxu0 %v318
    %354 = vmatprep.subr.mxu0 0.0
    %355 = vmatpush1.msra.mxu0 %v319
    %356 = vmatprep.subr.mxu0 0.0
    %357 = vmatpush1.msra.mxu0 %v320
    %358 = vmatprep.subr.mxu0 0.0
    %359 = vmatpush1.msra.mxu0 %v321
    %360 = vmatprep.subr.mxu0 0.0
    %361 = vmatpush1.msra.mxu0 %v322
    %362 = vmatprep.subr.mxu0 0.0
    %363 = vmatpush1.msra.mxu0 0.0
    %364 = vmatprep.subr.mxu0 0.0
    %365 = vmatpush1.msra.mxu0 0.0
    %366 = vmatprep.subr.mxu0 0.0
    %367 = vmatpush1.msra.mxu0 0.0
    %368 = vmatprep.subr.mxu0 0.0
    %369 = vmatpush1.msra.mxu0 0.0
    %370 = vmatprep.subr.mxu0 0.0
    %371 = vmatpush1.msra.mxu0 0.0
    %372 = vmatprep.subr.mxu0 0.0
    %373 = vmatpush1.msra.mxu0 0.0
    %374 = vmatprep.subr.mxu0 0.0
    %375 = vmatpush1.msra.mxu0 0.0
    %376 = vmatprep.subr.mxu0 0.0
    %377 = vmatpush1.msra.mxu0 0.0
    %378 = vmatprep.subr.mxu0 0.0
    %379 = vmatpush1.msra.mxu0 0.0
    %380 = vmatprep.subr.mxu0 0.0
    %381 = vmatpush1.msra.mxu0 0.0
    %382 = vmatprep.subr.mxu0 0.0
    %383 = vmatpush1.msra.mxu0 0.0
    %384 = vmatprep.subr.mxu0 0.0
    %385 = vmatpush1.msra.mxu0 0.0
    %386 = vmatprep.subr.mxu0 0.0
    %387 = vmatpush1.msra.mxu0 0.0
    %388 = vmatprep.subr.mxu0 0.0
    %389 = vmatpush1.msra.mxu0 0.0
    %390 = vmatprep.subr.mxu0 0.0
    %391 = vmatpush1.msra.mxu0 0.0
    %392 = vmatprep.subr.mxu0 0.0
    %393 = vmatpush1.msra.mxu0 0.0
    %394 = vmatprep.mubr.f32.mxu0 0.0
    %395 = vmatmul.mubr.f32.gmra.mrb[0].mxu0 %v306
    %v396 = vpop.f32.mrb[0].mxu0
    %v397 = vadd.f32 %v328, %v396
    %v398 = vpop.f32.mrb[0].mxu0
    %399 = vdwg.mxu0
    %v400 = vsub.f32 0.0, %v397
    %v401 = vmul.f32 %v400, 1.442695
    %v402 = vpow.pop %v401
    %v403 = vadd.f32 %v402, 1.0
    %v404 = vrcp.pop %v403
    %v405 = vmul.f32 1.0, %v404
    %406 = vst [vmem:[#allocation5] sm:$0xff] %v405
    // Predicated region
    $region42: #{tpu_custom_call.1} parent=1 // pred_check
      _
    $region43: #{tpu_custom_call.1} parent=1 // pred_check_branch
      %408 = sbr.rel (0) target = $region45
    $region44: #{tpu_custom_call.1} parent=1 // pred_region
      %s410 = ssub.s32 128, 128
      %411 = vsyncadd [#allocation4], %s410
      %s413 = sshll.u32 [#allocation5], 4
      %s414 = int_to_ptr.vmem [resolvable:$true] %s413
      %416 = dma.vmem_to_hbm [thread:$0]  %s414, 128, %s9, [#allocation4]
    $region45: #{tpu_custom_call.1} parent=1 // pred_fallthru
      _
    // Predicated region
    $region46: #{tpu_custom_call.1} parent=1 // pred_check
      _
    $region47: #{tpu_custom_call.1} parent=1 // pred_check_branch
      %418 = sbr.rel (0) target = $region49
    $region48: #{tpu_custom_call.1} parent=1 // pred_region
      %419 = dma.done [#allocation4], 128
    $region49: #{tpu_custom_call.1} parent=1 // pred_fallthru
      _
    %420 = vsyncpa [#allocation3], 1
    %421 = vsyncpa [#allocation4], 1

</llo_original>
